<compile_context>
chip_gen: v6e
topology: v6e:2x2x1
jax: 0.10.0
libtpu: 0.0.40
codegen_flags: <defaults>
</compile_context>

<pallas_src>
import functools

import jax
import jax.numpy as jnp
import numpy as np
from jax.experimental import pallas as pl
from jax.experimental.pallas import tpu as pltpu

EPS = 1e-5            # nn.BatchNorm2d default eps
LANE = 128            # TPU lane width
SUBLANE = 8
DEFAULT_TM = 512      # rows per M tile (multiple of 8), ~85% HBM roofline range
VMEM_LIMIT_BYTES = 32 * 1024 * 1024   # explicit scoped-VMEM budget (safe on v7x)

# MXU operand dtype for the fused conv matmul.  f32 keeps the 1e-4 test
# tolerance; switch to jnp.bfloat16 on v6e/v7x for full MXU throughput when
# the accuracy budget allows (accumulation stays f32 either way).
MXU_DTYPE = jnp.float32


def _round_up(x, m):
    return ((x + m - 1) // m) * m


def _choose_tm(m, tm=DEFAULT_TM):
    if m <= tm:
        return _round_up(m, SUBLANE)
    return tm


# ------------------------- Pallas kernels (hot path) -------------------------

def _bn_stats_kernel(x_ref, gamma_ref, beta_ref, scale_ref, shift_ref,
                     sum_ref, sq_ref, *, m_actual):
    """Pass 1: accumulate per-channel sum / sum-of-squares over M tiles; on the
    last tile finalize scale = gamma*rsqrt(var+eps), shift = beta - mean*scale.
    Zero-padded rows/lanes contribute nothing (division uses the true M)."""
    i = pl.program_id(0)

    @pl.when(i == 0)
    def _():
        sum_ref[...] = jnp.zeros_like(sum_ref)
        sq_ref[...] = jnp.zeros_like(sq_ref)

    x = x_ref[...].astype(jnp.float32)
    sum_ref[...] += jnp.sum(x, axis=0, keepdims=True)
    sq_ref[...] += jnp.sum(x * x, axis=0, keepdims=True)

    @pl.when(i == pl.num_programs(0) - 1)
    def _():
        inv_m = jnp.float32(1.0 / m_actual)
        mean = sum_ref[...] * inv_m
        var = sq_ref[...] * inv_m - mean * mean          # biased var (training BN)
        inv_std = jax.lax.rsqrt(var + EPS)               # EUP, once per channel
        scale = gamma_ref[...] * inv_std
        scale_ref[...] = scale
        shift_ref[...] = beta_ref[...] - mean * scale


def _bn_matmul_kernel(x_ref, scale_ref, shift_ref, w_ref, b_ref, o_ref, *,
                      mxu_dtype):
    """Pass 2 (fused): y = ((x * scale + shift) @ W + b) for one M tile.
    VPU normalize feeds the MXU directly; no HBM round trip of the BN output."""
    x = x_ref[...].astype(jnp.float32)
    xn = x * scale_ref[...] + shift_ref[...]
    y = jnp.dot(xn.astype(mxu_dtype), w_ref[...].astype(mxu_dtype),
                preferred_element_type=jnp.float32)
    o_ref[...] = (y + b_ref[...]).astype(o_ref.dtype)


def _bn_apply_kernel(x_ref, scale_ref, shift_ref, o_ref):
    """Pass 2 (fallback, no fused conv): y = x * scale + shift."""
    x = x_ref[...].astype(jnp.float32)
    o_ref[...] = (x * scale_ref[...] + shift_ref[...]).astype(o_ref.dtype)


# ------------------------------ pallas_call wrappers -------------------------

def _bn_scale_shift(x_flat, gamma_p, beta_p, m_actual, tm):
    mp, cp = x_flat.shape
    kernel = functools.partial(_bn_stats_kernel, m_actual=m_actual)
    return pl.pallas_call(
        kernel,
        out_shape=(jax.ShapeDtypeStruct((1, cp), jnp.float32),
                   jax.ShapeDtypeStruct((1, cp), jnp.float32)),
        grid=(mp // tm,),
        in_specs=[
            pl.BlockSpec((tm, cp), lambda i: (i, 0)),
            pl.BlockSpec((1, cp), lambda i: (0, 0)),
            pl.BlockSpec((1, cp), lambda i: (0, 0)),
        ],
        out_specs=(pl.BlockSpec((1, cp), lambda i: (0, 0)),
                   pl.BlockSpec((1, cp), lambda i: (0, 0))),
        scratch_shapes=[pltpu.VMEM((1, cp), jnp.float32),
                        pltpu.VMEM((1, cp), jnp.float32)],
        compiler_params=pltpu.CompilerParams(
            dimension_semantics=("arbitrary",),        # running reduction over M
            vmem_limit_bytes=VMEM_LIMIT_BYTES),
    )(x_flat, gamma_p, beta_p)


def _bn_matmul(x_flat, scale, shift, w_p, b_p, tm, out_dtype):
    mp, cp = x_flat.shape
    cout_p = w_p.shape[1]
    kernel = functools.partial(_bn_matmul_kernel, mxu_dtype=MXU_DTYPE)
    return pl.pallas_call(
        kernel,
        out_shape=jax.ShapeDtypeStruct((mp, cout_p), out_dtype),
        grid=(mp // tm,),
        in_specs=[
            pl.BlockSpec((tm, cp), lambda i: (i, 0)),
            pl.BlockSpec((1, cp), lambda i: (0, 0)),
            pl.BlockSpec((1, cp), lambda i: (0, 0)),
            pl.BlockSpec((cp, cout_p), lambda i: (0, 0)),
            pl.BlockSpec((1, cout_p), lambda i: (0, 0)),
        ],
        out_specs=pl.BlockSpec((tm, cout_p), lambda i: (i, 0)),
        compiler_params=pltpu.CompilerParams(
            dimension_semantics=("parallel",),         # megacore split on v7x
            vmem_limit_bytes=VMEM_LIMIT_BYTES),
    )(x_flat, scale, shift, w_p, b_p)


def _bn_apply(x_flat, scale, shift, tm, out_dtype):
    mp, cp = x_flat.shape
    return pl.pallas_call(
        _bn_apply_kernel,
        out_shape=jax.ShapeDtypeStruct((mp, cp), out_dtype),
        grid=(mp // tm,),
        in_specs=[
            pl.BlockSpec((tm, cp), lambda i: (i, 0)),
            pl.BlockSpec((1, cp), lambda i: (0, 0)),
            pl.BlockSpec((1, cp), lambda i: (0, 0)),
        ],
        out_specs=pl.BlockSpec((tm, cp), lambda i: (i, 0)),
        compiler_params=pltpu.CompilerParams(
            dimension_semantics=("parallel",),
            vmem_limit_bytes=VMEM_LIMIT_BYTES),
    )(x_flat, scale, shift)


# -------------------------------- layout glue ---------------------------------

def _nchw_to_flat_padded(x, c_pad, tm):
    """NCHW -> zero-padded (M_pad, C_pad) channels-last slab (lane-dense C)."""
    N, C, H, W = x.shape
    m = N * H * W
    xf = jnp.transpose(x, (0, 2, 3, 1)).reshape(m, C)
    m_pad = _round_up(m, tm)
    xf = jnp.pad(xf, ((0, m_pad - m), (0, c_pad - C)))
    return xf, (N, H, W), m


def _flat_to_nchw(y_flat, nhw, m_actual, c_actual):
    N, H, W = nhw
    y = y_flat[:m_actual, :c_actual]
    return jnp.transpose(y.reshape(N, H, W, c_actual), (0, 3, 1, 2))


# -------------------------------- module ports -------------------------------

class PointwiseConvFn:
    """Example `fn` (1x1 conv with bias), fused into the BN-apply kernel."""

    def __init__(self, key, dim_in, dim_out):
        kw, kb = jax.random.split(key)
        self.w = jax.random.normal(kw, (dim_in, dim_out), jnp.float32) * 0.1
        self.b = jax.random.normal(kb, (dim_out,), jnp.float32) * 0.1

    def __call__(self, x):
        # Standalone path (not used when fused inside PreBatchNorm).
        C, Cout = self.w.shape
        c_pad = _round_up(C, LANE)
        cout_p = _round_up(Cout, LANE)
        tm = _choose_tm(x.shape[0] * x.shape[2] * x.shape[3])
        x_flat, nhw, m = _nchw_to_flat_padded(x, c_pad, tm)
        ones = jnp.ones((1, c_pad), jnp.float32)
        zeros = jnp.zeros((1, c_pad), jnp.float32)
        w_p = jnp.pad(self.w, ((0, c_pad - C), (0, cout_p - Cout)))
        b_p = jnp.pad(self.b, (0, cout_p - Cout)).reshape(1, cout_p)
        y_flat = _bn_matmul(x_flat, ones, zeros, w_p, b_p, tm, x.dtype)
        return _flat_to_nchw(y_flat, nhw, m, Cout)


class PreBatchNorm:
    """JAX/Pallas port of PreBatchNorm: fn(BatchNorm2d(x)), training-mode stats.

    When `fn` is a 1x1 conv (the common case inside LinearSelfAttention /
    ConvFFN), the normalize + matmul are fused into a single tiled Pallas pass.
    """

    def __init__(self, dim, fn, tile_m=DEFAULT_TM):
        # nn.BatchNorm2d default init: weight (gamma) = 1, bias (beta) = 0
        self.gamma = jnp.ones((dim,), jnp.float32)
        self.beta = jnp.zeros((dim,), jnp.float32)
        self.tile_m = tile_m
        # TODO(synk): `fn` is an arbitrary wrapped submodule in the original
        # model; non-pointwise fns fall back to BN-apply kernel + JAX callable.
        self.fn = fn

    def __call__(self, x, **kwargs):
        N, C, H, W = x.shape
        c_pad = _round_up(C, LANE)
        tm = _choose_tm(N * H * W, self.tile_m)
        x_flat, nhw, m = _nchw_to_flat_padded(x, c_pad, tm)
        gamma_p = jnp.pad(self.gamma, (0, c_pad - C)).reshape(1, c_pad)
        beta_p = jnp.pad(self.beta, (0, c_pad - C)).reshape(1, c_pad)

        # Pass 1: global batch statistics -> per-channel scale/shift.
        scale, shift = _bn_scale_shift(x_flat, gamma_p, beta_p, m, tm)

        if isinstance(self.fn, PointwiseConvFn):
            # Pass 2 (fused): normalize + 1x1 conv in one tiled pallas_call.
            Cout = self.fn.w.shape[1]
            cout_p = _round_up(Cout, LANE)
            w_p = jnp.pad(self.fn.w, ((0, c_pad - C), (0, cout_p - Cout)))
            b_p = jnp.pad(self.fn.b, (0, cout_p - Cout)).reshape(1, cout_p)
            y_flat = _bn_matmul(x_flat, scale, shift, w_p, b_p, tm, x.dtype)
            return _flat_to_nchw(y_flat, nhw, m, Cout)

        # Fallback: BN-apply kernel, then arbitrary JAX fn.
        y_flat = _bn_apply(x_flat, scale, shift, tm, x.dtype)
        y = _flat_to_nchw(y_flat, nhw, m, C)
        return self.fn(y, **kwargs)


# -------------------------------- reference -----------------------------------

def _reference(x, gamma, beta, w, b):
    mean = jnp.mean(x, axis=(0, 2, 3), keepdims=True)
    var = jnp.mean((x - mean) ** 2, axis=(0, 2, 3), keepdims=True)
    y = (x - mean) * jax.lax.rsqrt(var + EPS)
    y = y * gamma[None, :, None, None] + beta[None, :, None, None]
    out = jnp.einsum("nchw,cd->ndhw", y, w) + b[None, :, None, None]
    return out


# ----------------------------------- main -------------------------------------

if __name__ == "__main__":
    key = jax.random.PRNGKey(0)
    kx, kfn = jax.random.split(key)

    N, C, H, W = 2, 4, 16, 16
    x = jax.random.normal(kx, (N, C, H, W), jnp.float32)

    fn = PointwiseConvFn(kfn, C, C)
    # tile_m=128 at this small test size forces a 4-tile grid so the
    # init/accumulate/finalize stats path and the parallel apply grid are both
    # exercised (production default stays 512 rows/tile).
    module = PreBatchNorm(C, fn, tile_m=128)

    out = module(x)
    out = jax.block_until_ready(out)

    ref = _reference(x, module.gamma, module.beta, fn.w, fn.b)
    np.testing.assert_allclose(np.asarray(out), np.asarray(ref),
                               rtol=1e-4, atol=1e-4)

    print("KERNEL_OK")
</pallas_src>

<mosaic_0001>
module attributes {stable_mosaic.version = 11 : i64} {
  func.func @_bn_stats_kernel(%arg0: i32, %arg1: memref<128x128xf32, #tpu.memory_space<vmem>>, %arg2: memref<1x128xf32, #tpu.memory_space<vmem>>, %arg3: memref<1x128xf32, #tpu.memory_space<vmem>>, %arg4: memref<1x128xf32, #tpu.memory_space<vmem>>, %arg5: memref<1x128xf32, #tpu.memory_space<vmem>>, %arg6: memref<1x128xf32, #tpu.memory_space<vmem>>, %arg7: memref<1x128xf32, #tpu.memory_space<vmem>>) attributes {dimension_semantics = [#tpu.dimension_semantics<arbitrary>], iteration_bounds = array<i64: 4>, scalar_prefetch = 0 : i64, scratch_operands = 2 : i64, tpu.core_type = #tpu.core_type<tc>, window_params = [{transform_indices = @transform_0, window_bounds = array<i64: 128, 128>}, {pipeline_mode = #tpu.pipeline_mode<synchronous>, transform_indices = @transform_1, window_bounds = array<i64: 1, 128>}, {pipeline_mode = #tpu.pipeline_mode<synchronous>, transform_indices = @transform_2, window_bounds = array<i64: 1, 128>}, {pipeline_mode = #tpu.pipeline_mode<synchronous>, transform_indices = @transform_3, window_bounds = array<i64: 1, 128>}, {pipeline_mode = #tpu.pipeline_mode<synchronous>, transform_indices = @transform_4, window_bounds = array<i64: 1, 128>}]} {
    %c0_i32 = arith.constant 0 : i32
    %0 = arith.cmpi eq, %arg0, %c0_i32 : i32
    %1 = arith.extui %0 : i1 to i32
    %c0_i32_0 = arith.constant 0 : i32
    %2 = arith.cmpi ne, %1, %c0_i32_0 : i32
    scf.if %2 {
      %cst_12 = arith.constant 0.000000e+00 : f32
      %18 = vector.broadcast %cst_12 : f32 to vector<1x128xf32>
      %c0_13 = arith.constant 0 : index
      %c0_14 = arith.constant 0 : index
      %19 = vector.load %arg6[%c0_13, %c0_14] : memref<1x128xf32, #tpu.memory_space<vmem>>, vector<1x128xf32>
      tpu.vector_store %arg6[%c0_13, %c0_14], %18 {strides = array<i32>} : memref<1x128xf32, #tpu.memory_space<vmem>>, vector<1x128xf32>,
      %cst_15 = arith.constant 0.000000e+00 : f32
      %20 = vector.broadcast %cst_15 : f32 to vector<1x128xf32>
      %c0_16 = arith.constant 0 : index
      %c0_17 = arith.constant 0 : index
      %21 = vector.load %arg7[%c0_16, %c0_17] : memref<1x128xf32, #tpu.memory_space<vmem>>, vector<1x128xf32>
      tpu.vector_store %arg7[%c0_16, %c0_17], %20 {strides = array<i32>} : memref<1x128xf32, #tpu.memory_space<vmem>>, vector<1x128xf32>,
    } else {
    }
    %c0 = arith.constant 0 : index
    %c0_1 = arith.constant 0 : index
    %3 = vector.load %arg1[%c0, %c0_1] : memref<128x128xf32, #tpu.memory_space<vmem>>, vector<128x128xf32>
    %c0_2 = arith.constant 0 : index
    %c0_3 = arith.constant 0 : index
    %4 = vector.load %arg6[%c0_2, %c0_3] : memref<1x128xf32, #tpu.memory_space<vmem>>, vector<1x128xf32>
    %cst = arith.constant dense<0.000000e+00> : vector<128xf32>
    %5 = vector.multi_reduction <add>, %3, %cst [0] : vector<128x128xf32> to vector<128xf32>
    %6 = vector.shape_cast %5 : vector<128xf32> to vector<1x128xf32>
    %7 = arith.addf %4, %6 : vector<1x128xf32>
    %c0_4 = arith.constant 0 : index
    %c0_5 = arith.constant 0 : index
    %8 = vector.load %arg6[%c0_4, %c0_5] : memref<1x128xf32, #tpu.memory_space<vmem>>, vector<1x128xf32>
    tpu.vector_store %arg6[%c0_4, %c0_5], %7 {strides = array<i32>} : memref<1x128xf32, #tpu.memory_space<vmem>>, vector<1x128xf32>,
    %c0_6 = arith.constant 0 : index
    %c0_7 = arith.constant 0 : index
    %9 = vector.load %arg7[%c0_6, %c0_7] : memref<1x128xf32, #tpu.memory_space<vmem>>, vector<1x128xf32>
    %10 = arith.mulf %3, %3 : vector<128x128xf32>
    %cst_8 = arith.constant dense<0.000000e+00> : vector<128xf32>
    %11 = vector.multi_reduction <add>, %10, %cst_8 [0] : vector<128x128xf32> to vector<128xf32>
    %12 = vector.shape_cast %11 : vector<128xf32> to vector<1x128xf32>
    %13 = arith.addf %9, %12 : vector<1x128xf32>
    %c0_9 = arith.constant 0 : index
    %c0_10 = arith.constant 0 : index
    %14 = vector.load %arg7[%c0_9, %c0_10] : memref<1x128xf32, #tpu.memory_space<vmem>>, vector<1x128xf32>
    tpu.vector_store %arg7[%c0_9, %c0_10], %13 {strides = array<i32>} : memref<1x128xf32, #tpu.memory_space<vmem>>, vector<1x128xf32>,
    %c3_i32 = arith.constant 3 : i32
    %15 = arith.cmpi eq, %arg0, %c3_i32 : i32
    %16 = arith.extui %15 : i1 to i32
    %c0_i32_11 = arith.constant 0 : i32
    %17 = arith.cmpi ne, %16, %c0_i32_11 : i32
    scf.if %17 {
      %c0_12 = arith.constant 0 : index
      %c0_13 = arith.constant 0 : index
      %18 = vector.load %arg6[%c0_12, %c0_13] : memref<1x128xf32, #tpu.memory_space<vmem>>, vector<1x128xf32>
      %cst_14 = arith.constant 0.001953125 : f32
      %19 = vector.broadcast %cst_14 : f32 to vector<1x128xf32>
      %20 = arith.mulf %18, %19 : vector<1x128xf32>
      %c0_15 = arith.constant 0 : index
      %c0_16 = arith.constant 0 : index
      %21 = vector.load %arg7[%c0_15, %c0_16] : memref<1x128xf32, #tpu.memory_space<vmem>>, vector<1x128xf32>
      %cst_17 = arith.constant 0.001953125 : f32
      %22 = vector.broadcast %cst_17 : f32 to vector<1x128xf32>
      %23 = arith.mulf %21, %22 : vector<1x128xf32>
      %24 = arith.mulf %20, %20 : vector<1x128xf32>
      %25 = arith.subf %23, %24 : vector<1x128xf32>
      %cst_18 = arith.constant 9.99999974E-6 : f32
      %26 = vector.broadcast %cst_18 : f32 to vector<1x128xf32>
      %27 = arith.addf %25, %26 : vector<1x128xf32>
      %28 = math.rsqrt %27 : vector<1x128xf32>
      %c0_19 = arith.constant 0 : index
      %c0_20 = arith.constant 0 : index
      %29 = vector.load %arg2[%c0_19, %c0_20] : memref<1x128xf32, #tpu.memory_space<vmem>>, vector<1x128xf32>
      %30 = arith.mulf %29, %28 : vector<1x128xf32>
      %c0_21 = arith.constant 0 : index
      %c0_22 = arith.constant 0 : index
      %31 = vector.load %arg4[%c0_21, %c0_22] : memref<1x128xf32, #tpu.memory_space<vmem>>, vector<1x128xf32>
      tpu.vector_store %arg4[%c0_21, %c0_22], %30 {strides = array<i32>} : memref<1x128xf32, #tpu.memory_space<vmem>>, vector<1x128xf32>,
      %c0_23 = arith.constant 0 : index
      %c0_24 = arith.constant 0 : index
      %32 = vector.load %arg3[%c0_23, %c0_24] : memref<1x128xf32, #tpu.memory_space<vmem>>, vector<1x128xf32>
      %33 = arith.mulf %20, %30 : vector<1x128xf32>
      %34 = arith.subf %32, %33 : vector<1x128xf32>
      %c0_25 = arith.constant 0 : index
      %c0_26 = arith.constant 0 : index
      %35 = vector.load %arg5[%c0_25, %c0_26] : memref<1x128xf32, #tpu.memory_space<vmem>>, vector<1x128xf32>
      tpu.vector_store %arg5[%c0_25, %c0_26], %34 {strides = array<i32>} : memref<1x128xf32, #tpu.memory_space<vmem>>, vector<1x128xf32>,
    } else {
    }
    return
  }
  func.func @transform_0(%arg0: i32) -> (i32, i32) {
    %c0_i32 = arith.constant 0 : i32
    %c0_i32_0 = arith.constant 0 : i32
    return %arg0, %c0_i32 : i32, i32
  }
  func.func @transform_1(%arg0: i32) -> (i32, i32) {
    %c0_i32 = arith.constant 0 : i32
    %c0_i32_0 = arith.constant 0 : i32
    %c0_i32_1 = arith.constant 0 : i32
    return %c0_i32, %c0_i32_0 : i32, i32
  }
  func.func @transform_2(%arg0: i32) -> (i32, i32) {
    %c0_i32 = arith.constant 0 : i32
    %c0_i32_0 = arith.constant 0 : i32
    %c0_i32_1 = arith.constant 0 : i32
    return %c0_i32, %c0_i32_0 : i32, i32
  }
  func.func @transform_3(%arg0: i32) -> (i32, i32) {
    %c0_i32 = arith.constant 0 : i32
    %c0_i32_0 = arith.constant 0 : i32
    %c0_i32_1 = arith.constant 0 : i32
    return %c0_i32, %c0_i32_0 : i32, i32
  }
  func.func @transform_4(%arg0: i32) -> (i32, i32) {
    %c0_i32 = arith.constant 0 : i32
    %c0_i32_0 = arith.constant 0 : i32
    %c0_i32_1 = arith.constant 0 : i32
    return %c0_i32, %c0_i32_0 : i32, i32
  }
}

</mosaic_0001>

<llo_original>
// kernel: tpu_custom_call.1
$region0: #{tpu_custom_call.1}
  #allocation0 [shape = 'u32[]', space=smem, size = 0x4, offset = 0x4, fixed_abs, tag = 'smem constant byte address 0x4 - core index']
  #allocation1 [shape = 'u32[144,128]{1,0:T(1,128)}', space=vmem, size = 0x12000, scoped, tag = 'internal scratch']
  #allocation2 [shape = 'f32[1,128]{1,0:T(1,128)}', space=vmem, size = 0x200, scoped, tag = 'scratch operand']
  #allocation3 [shape = 'f32[1,128]{1,0:T(1,128)}', space=vmem, size = 0x200, scoped, tag = 'scratch operand']
  %s0 = inlined_call_operand.hbm [shape: f32[512,128], index: 0, kind: input, shape index: {}]
  %s1 = inlined_call_operand.vmem [shape: f32[1,128], index: 1, kind: input, shape index: {}]
  %s2 = inlined_call_operand.vmem [shape: f32[1,128], index: 2, kind: input, shape index: {}]
  %s3 = inlined_call_operand.hbm [shape: f32[1,128], index: 3, kind: output, shape index: {0}]
  %s4 = inlined_call_operand.hbm [shape: f32[1,128], index: 4, kind: output, shape index: {1}]
  %5 = xla_tuple %s3, %s4
  %s6 = sld [smem:[#allocation0]]
  $region65: #{tpu_custom_call.1} parent=0
    _
  %s8 = ssub.s32 1, %s6
  %s9 = scalar_select 0, %s8, %s6
  $region1: #{tpu_custom_call.1} parent=0
    #allocation4 [shape = 'u8[131072]{0}', space=vmem, size = 0x20000, scoped, tag = 'input window, operand 0']
    #allocation5 [shape = 's32[2]{0}', space=sflag, size = 0x8, scoped, tag = 'scoped memory for tpu_custom_call.1']
    #allocation6 [shape = 's32[2]{0}', space=sflag, size = 0x8, scoped, tag = 'scoped memory for tpu_custom_call.1']
    #allocation7 [shape = 'u8[512]{0}', space=vmem, size = 0x400, scoped, tag = 'output window, operand 0, single buffered']
    #allocation8 [shape = 'u8[512]{0}', space=vmem, size = 0x400, scoped, tag = 'output window, operand 1, single buffered']
    #allocation9 [shape = 's32[1]{0}', space=sflag, size = 0x4, scoped, tag = 'scoped memory for tpu_custom_call.1']
    %10 = vsyncpa [#allocation5], 0
    %s11 = scalar_lea.sflag [#allocation5], 1
    %12 = vsyncpa %s11, 0
    %13 = vsyncpa [#allocation6], 0
    %14 = vsyncpa [#allocation9], 0
    loop: start=0, step=1, limit=6
    $region2: #{tpu_custom_call.1} parent=1 // loop_pre_header
      _
    $region3: #{tpu_custom_call.1} parent=1 // loop_header
      %s16 = sphi 0, %s20
      %p17 = scmp.ge.s32.totalorder %s16, 6
      %s26 = sphi 0, %s28
      %s29 = sphi 0, %s26
      %s30 = sphi 0, %s29
      %s46 = sphi 0, %s30
      %s50 = sphi 0, %s50
      %s52 = sphi 0, %s50
      %s53 = sphi 0, %s52
      %s67 = sphi 0, %s53
      %s71 = sphi 0, %s71
      %s73 = sphi 0, %s71
      %s74 = sphi 0, %s73
      %s88 = sphi 0, %s74
      %s92 = sphi 0, %s92
      %s94 = sphi 0, %s92
      %s95 = sphi 0, %s94
      %s109 = sphi 0, %s95
      %s113 = sphi 0, %s113
      %s115 = sphi 0, %s113
      %s116 = sphi 0, %s115
      %s130 = sphi 0, %s116
    $region4: #{tpu_custom_call.1} parent=1 // loop_header_branch
      %19 = sbr.rel (%p17) target = $region8
    $region5: #{tpu_custom_call.1} parent=1 // loop_body
      %s21 = ssub.s32 %s16, 1
      %s22 = ssub.s32 %s16, 2
      %s23 = sadd.s32 %s16, 1
      %s24 = ssub.s32 %s16, %s23
      %p25 = scmp.eq.s32.totalorder %s24, 0
      %s27 = sadd.s32 %s26, 1
      %s28 = scalar_select %p25, %s26, %s27
      %p31 = pneg %p25
      %p32 = scmp.eq.s32.totalorder %s16, 3
      %p33 = por %p31, %p32
      %p34 = scmp.ne.s32.totalorder %s26, %s29
      %p35 = scmp.eq.s32.totalorder %s16, 0
      %p36 = por %p34, %p35
      %p37 = scmp.ne.s32.totalorder %s26, %s29
      %p38 = scmp.eq.s32.totalorder %s21, 3
      %p39 = por %p37, %p38
      %p40 = scmp.ne.s32.totalorder %s29, %s30
      %p41 = scmp.eq.s32.totalorder %s21, 0
      %p42 = por %p40, %p41
      %p43 = scmp.ne.s32.totalorder %s29, %s30
      %p44 = scmp.eq.s32.totalorder %s22, 3
      %p45 = por %p43, %p44
      %p47 = scmp.ne.s32.totalorder %s30, %s46
      %p48 = scmp.eq.s32.totalorder %s22, 0
      %p49 = por %p47, %p48
      %s51 = sadd.s32 %s50, 1
      %p54 = scmp.eq.s32.totalorder %s16, 3
      %p55 = scmp.ne.s32.totalorder %s50, %s52
      %p56 = scmp.eq.s32.totalorder %s16, 0
      %p57 = por %p55, %p56
      %p58 = scmp.ne.s32.totalorder %s50, %s52
      %p59 = scmp.eq.s32.totalorder %s21, 3
      %p60 = por %p58, %p59
      %p61 = scmp.ne.s32.totalorder %s52, %s53
      %p62 = scmp.eq.s32.totalorder %s21, 0
      %p63 = por %p61, %p62
      %p64 = scmp.ne.s32.totalorder %s52, %s53
      %p65 = scmp.eq.s32.totalorder %s22, 3
      %p66 = por %p64, %p65
      %p68 = scmp.ne.s32.totalorder %s53, %s67
      %p69 = scmp.eq.s32.totalorder %s22, 0
      %p70 = por %p68, %p69
      %s72 = sadd.s32 %s71, 1
      %p75 = scmp.eq.s32.totalorder %s16, 3
      %p76 = scmp.ne.s32.totalorder %s71, %s73
      %p77 = scmp.eq.s32.totalorder %s16, 0
      %p78 = por %p76, %p77
      %p79 = scmp.ne.s32.totalorder %s71, %s73
      %p80 = scmp.eq.s32.totalorder %s21, 3
      %p81 = por %p79, %p80
      %p82 = scmp.ne.s32.totalorder %s73, %s74
      %p83 = scmp.eq.s32.totalorder %s21, 0
      %p84 = por %p82, %p83
      %p85 = scmp.ne.s32.totalorder %s73, %s74
      %p86 = scmp.eq.s32.totalorder %s22, 3
      %p87 = por %p85, %p86
      %p89 = scmp.ne.s32.totalorder %s74, %s88
      %p90 = scmp.eq.s32.totalorder %s22, 0
      %p91 = por %p89, %p90
      %s93 = sadd.s32 %s92, 1
      %p96 = scmp.eq.s32.totalorder %s16, 3
      %p97 = scmp.ne.s32.totalorder %s92, %s94
      %p98 = scmp.eq.s32.totalorder %s16, 0
      %p99 = por %p97, %p98
      %p100 = scmp.ne.s32.totalorder %s92, %s94
      %p101 = scmp.eq.s32.totalorder %s21, 3
      %p102 = por %p100, %p101
      %p103 = scmp.ne.s32.totalorder %s94, %s95
      %p104 = scmp.eq.s32.totalorder %s21, 0
      %p105 = por %p103, %p104
      %p106 = scmp.ne.s32.totalorder %s94, %s95
      %p107 = scmp.eq.s32.totalorder %s22, 3
      %p108 = por %p106, %p107
      %p110 = scmp.ne.s32.totalorder %s95, %s109
      %p111 = scmp.eq.s32.totalorder %s22, 0
      %p112 = por %p110, %p111
      %s114 = sadd.s32 %s113, 1
      %p117 = scmp.eq.s32.totalorder %s16, 3
      %p118 = scmp.ne.s32.totalorder %s113, %s115
      %p119 = scmp.eq.s32.totalorder %s16, 0
      %p120 = por %p118, %p119
      %p121 = scmp.ne.s32.totalorder %s113, %s115
      %p122 = scmp.eq.s32.totalorder %s21, 3
      %p123 = por %p121, %p122
      %p124 = scmp.ne.s32.totalorder %s115, %s116
      %p125 = scmp.eq.s32.totalorder %s21, 0
      %p126 = por %p124, %p125
      %p127 = scmp.ne.s32.totalorder %s115, %s116
      %p128 = scmp.eq.s32.totalorder %s22, 3
      %p129 = por %p127, %p128
      %p131 = scmp.ne.s32.totalorder %s116, %s130
      %p132 = scmp.eq.s32.totalorder %s22, 0
      %p133 = por %p131, %p132
      %p134 = scmp.le.s32.totalorder 1, %s16
      %p135 = scmp.lt.s32.totalorder %s16, 5
      %p136 = pnand %p134, %p135
      %p137 = pneg %p136
      // Predicated region
      $region9: #{tpu_custom_call.1} parent=5 // pred_check
        _
      $region10: #{tpu_custom_call.1} parent=5 // pred_check_branch
        %139 = sbr.rel (%p136) target = $region12
      $region11: #{tpu_custom_call.1} parent=5 // pred_region
        %s140 = ssub.s32 %s16, 1
        // Predicated region
        $region13: #{tpu_custom_call.1} parent=11 // pred_check
          %p141 = pneg %p63
        $region14: #{tpu_custom_call.1} parent=11 // pred_check_branch
          %143 = sbr.rel (%p141) target = $region16
        $region15: #{tpu_custom_call.1} parent=11 // pred_region
          _
        $region16: #{tpu_custom_call.1} parent=11 // pred_fallthru
          _
        // Predicated region
        $region17: #{tpu_custom_call.1} parent=11 // pred_check
          %p144 = pneg %p84
        $region18: #{tpu_custom_call.1} parent=11 // pred_check_branch
          %146 = sbr.rel (%p144) target = $region20
        $region19: #{tpu_custom_call.1} parent=11 // pred_region
          _
        $region20: #{tpu_custom_call.1} parent=11 // pred_fallthru
          _
      $region12: #{tpu_custom_call.1} parent=5 // pred_fallthru
        _
      %p147 = scmp.lt.s32.totalorder %s16, 4
      // Predicated region
      $region21: #{tpu_custom_call.1} parent=5 // pred_check
        %p148 = pneg %p147
      $region22: #{tpu_custom_call.1} parent=5 // pred_check_branch
        %150 = sbr.rel (%p148) target = $region24
      $region23: #{tpu_custom_call.1} parent=5 // pred_region
        // Predicated region
        $region25: #{tpu_custom_call.1} parent=23 // pred_check
          %p151 = pneg %p36
        $region26: #{tpu_custom_call.1} parent=23 // pred_check_branch
          %153 = sbr.rel (%p151) target = $region28
        $region27: #{tpu_custom_call.1} parent=23 // pred_region
          %s154 = sand.u32 %s26, 1
          %s155 = scalar_lea.sflag [#allocation5], %s154
          %s156 = sand.u32 %s26, 1
          %s157 = smul.addr %s156, 128
          %s158 = scalar_lea.vmem [#allocation4], %s157
          %s159 = smul.u32 16, %s16
          %s161 = ssub.s32 2048, 2048
          %162 = vsyncadd %s155, %s161
          %s163 = smul.addr %s159, 128
          %s164 = scalar_lea.hbm %s0, %s163
          %s165 = sshll.u32 %s158, 4
          %s166 = int_to_ptr.vmem [resolvable:$true] %s165
          %171 = dma.hbm_to_vmem [thread:$0]  %s164, 2048, %s166, %s155, 128, 128, 8
        $region28: #{tpu_custom_call.1} parent=23 // pred_fallthru
          _
      $region24: #{tpu_custom_call.1} parent=5 // pred_fallthru
        _
      %p172 = scmp.le.s32.totalorder 1, %s16
      %p173 = scmp.lt.s32.totalorder %s16, 5
      %p174 = pnand %p172, %p173
      %p175 = pneg %p174
      // Predicated region
      $region29: #{tpu_custom_call.1} parent=5 // pred_check
        _
      $region30: #{tpu_custom_call.1} parent=5 // pred_check_branch
        %177 = sbr.rel (%p174) target = $region32
      $region31: #{tpu_custom_call.1} parent=5 // pred_region
        %s178 = ssub.s32 %s16, 1
        %s179 = sand.u32 %s29, 1
        %s180 = scalar_lea.sflag [#allocation5], %s179
        %s181 = sand.u32 %s29, 1
        %s182 = smul.addr %s181, 128
        %s183 = scalar_lea.vmem [#allocation4], %s182
        // Predicated region
        $region33: #{tpu_custom_call.1} parent=31 // pred_check
          %p184 = pneg %p42
        $region34: #{tpu_custom_call.1} parent=31 // pred_check_branch
          %186 = sbr.rel (%p184) target = $region36
        $region35: #{tpu_custom_call.1} parent=31 // pred_region
          %187 = dma.done %s180, 2048
        $region36: #{tpu_custom_call.1} parent=31 // pred_fallthru
          _
        %s188 = sand.u32 %s29, 1
        %s189 = scalar_lea.sflag [#allocation5], %s188
        %s190 = sand.u32 %s29, 1
        %s191 = smul.addr %s190, 128
        %s192 = scalar_lea.vmem [#allocation4], %s191
        %p193 = pneg %p42
        %p194 = pneg %p39
        %p195 = pneg %p63
        %p196 = pneg %p60
        %p197 = pneg %p84
        %p198 = pneg %p81
        %p199 = pneg %p105
        %p200 = pneg %p102
        %p201 = pneg %p126
        %p202 = pneg %p123
        %s203 = smul.u32 16, %s21
        %p204 = scmp.eq.s32.totalorder %s21, 0
        // Predicated region
        $region37: #{tpu_custom_call.1} parent=31 // pred_check
          %p205 = pneg %p204
        $region38: #{tpu_custom_call.1} parent=31 // pred_check_branch
          %207 = sbr.rel (%p205) target = $region40
        $region39: #{tpu_custom_call.1} parent=31 // pred_region
          %208 = vst [vmem:[#allocation2] sm:$0x1] 0.0
          %209 = vst [vmem:[#allocation3] sm:$0x1] 0.0
        $region40: #{tpu_custom_call.1} parent=31 // pred_fallthru
          _
        %v210 = vld [vmem:[%s183] sm:$0xff]
        %v211 = vld [vmem:[%s183 + $0x8] sm:$0xff]
        %v212 = vld [vmem:[%s183 + $0x10] sm:$0xff]
        %v213 = vld [vmem:[%s183 + $0x18] sm:$0xff]
        %v214 = vld [vmem:[%s183 + $0x20] sm:$0xff]
        %v215 = vld [vmem:[%s183 + $0x28] sm:$0xff]
        %v216 = vld [vmem:[%s183 + $0x30] sm:$0xff]
        %v217 = vld [vmem:[%s183 + $0x38] sm:$0xff]
        %v218 = vld [vmem:[%s183 + $0x40] sm:$0xff]
        %v219 = vld [vmem:[%s183 + $0x48] sm:$0xff]
        %v220 = vld [vmem:[%s183 + $0x50] sm:$0xff]
        %v221 = vld [vmem:[%s183 + $0x58] sm:$0xff]
        %v222 = vld [vmem:[%s183 + $0x60] sm:$0xff]
        %v223 = vld [vmem:[%s183 + $0x68] sm:$0xff]
        %v224 = vld [vmem:[%s183 + $0x70] sm:$0xff]
        %v225 = vld [vmem:[%s183 + $0x78] sm:$0xff]
        %v226 = vld [vmem:[#allocation2] sm:$0x1]
        %v227 = vadd.f32 %v210, %v211
        %v228 = vadd.f32 %v227, %v212
        %v229 = vadd.f32 %v228, %v213
        %v230 = vadd.f32 %v229, %v214
        %v231 = vadd.f32 %v230, %v215
        %v232 = vadd.f32 %v231, %v216
        %v233 = vadd.f32 %v232, %v217
        %v234 = vadd.f32 %v233, %v218
        %v235 = vadd.f32 %v234, %v219
        %v236 = vadd.f32 %v235, %v220
        %v237 = vadd.f32 %v236, %v221
        %v238 = vadd.f32 %v237, %v222
        %v239 = vadd.f32 %v238, %v223
        %v240 = vadd.f32 %v239, %v224
        %v241 = vadd.f32 %v240, %v225
        %v242 = vrot.slane %v241, 4
        %v243 = vadd.f32 %v241, %v242
        %v244 = vrot.slane %v243, 2
        %v245 = vadd.f32 %v243, %v244
        %v246 = vrot.slane %v245, 1
        %v247 = vadd.f32 %v245, %v246
        %v248 = vadd.f32 %v226, %v247
        %249 = vst [vmem:[#allocation2] sm:$0x1] %v248
        %v250 = vld [vmem:[#allocation3] sm:$0x1]
        %v251 = vmul.f32 %v210, %v210
        %v252 = vmul.f32 %v211, %v211
        %v253 = vmul.f32 %v212, %v212
        %v254 = vmul.f32 %v213, %v213
        %v255 = vmul.f32 %v214, %v214
        %v256 = vmul.f32 %v215, %v215
        %v257 = vmul.f32 %v216, %v216
        %v258 = vmul.f32 %v217, %v217
        %v259 = vmul.f32 %v218, %v218
        %v260 = vmul.f32 %v219, %v219
        %v261 = vmul.f32 %v220, %v220
        %v262 = vmul.f32 %v221, %v221
        %v263 = vmul.f32 %v222, %v222
        %v264 = vmul.f32 %v223, %v223
        %v265 = vmul.f32 %v224, %v224
        %v266 = vmul.f32 %v225, %v225
        %v267 = vadd.f32 %v251, %v252
        %v268 = vadd.f32 %v267, %v253
        %v269 = vadd.f32 %v268, %v254
        %v270 = vadd.f32 %v269, %v255
        %v271 = vadd.f32 %v270, %v256
        %v272 = vadd.f32 %v271, %v257
        %v273 = vadd.f32 %v272, %v258
        %v274 = vadd.f32 %v273, %v259
        %v275 = vadd.f32 %v274, %v260
        %v276 = vadd.f32 %v275, %v261
        %v277 = vadd.f32 %v276, %v262
        %v278 = vadd.f32 %v277, %v263
        %v279 = vadd.f32 %v278, %v264
        %v280 = vadd.f32 %v279, %v265
        %v281 = vadd.f32 %v280, %v266
        %v282 = vrot.slane %v281, 4
        %v283 = vadd.f32 %v281, %v282
        %v284 = vrot.slane %v283, 2
        %v285 = vadd.f32 %v283, %v284
        %v286 = vrot.slane %v285, 1
        %v287 = vadd.f32 %v285, %v286
        %v288 = vadd.f32 %v250, %v287
        %289 = vst [vmem:[#allocation3] sm:$0x1] %v288
        %p290 = scmp.eq.s32.totalorder %s21, 3
        // Predicated region
        $region41: #{tpu_custom_call.1} parent=31 // pred_check
          %p291 = pneg %p290
        $region42: #{tpu_custom_call.1} parent=31 // pred_check_branch
          %293 = sbr.rel (%p291) target = $region44
        $region43: #{tpu_custom_call.1} parent=31 // pred_region
          %v294 = vld [vmem:[#allocation2] sm:$0x1]
          %v295 = vmul.f32 %v294, 0.001953125
          %v296 = vld [vmem:[#allocation3] sm:$0x1]
          %v297 = vmul.f32 %v296, 0.001953125
          %v298 = vmul.f32 %v295, %v295
          %v299 = vsub.f32 %v297, %v298
          %v300 = vadd.f32 %v299, 1e-05
          %v301 = vrsqrt.pop %v300
          %v302 = vld [vmem:[%s1] sm:$0x1]
          %v303 = vmul.f32 %v302, %v301
          %304 = vst [vmem:[#allocation7] sm:$0x1] %v303
          %v305 = vld [vmem:[%s2] sm:$0x1]
          %v306 = vmul.f32 %v295, %v303
          %v307 = vsub.f32 %v305, %v306
          %308 = vst [vmem:[#allocation8] sm:$0x1] %v307
        $region44: #{tpu_custom_call.1} parent=31 // pred_fallthru
          _
        // Predicated region
        $region45: #{tpu_custom_call.1} parent=31 // pred_check
          %p309 = pneg %p102
        $region46: #{tpu_custom_call.1} parent=31 // pred_check_branch
          %311 = sbr.rel (%p309) target = $region48
        $region47: #{tpu_custom_call.1} parent=31 // pred_region
          %s313 = ssub.s32 16, 16
          %314 = vsyncadd [#allocation6], %s313
          %s316 = sshll.u32 [#allocation7], 4
          %s317 = int_to_ptr.vmem [resolvable:$true] %s316
          %319 = dma.vmem_to_hbm [thread:$0]  %s317, 16, %s3, [#allocation6]
        $region48: #{tpu_custom_call.1} parent=31 // pred_fallthru
          _
        // Predicated region
        $region49: #{tpu_custom_call.1} parent=31 // pred_check
          %p320 = pneg %p123
        $region50: #{tpu_custom_call.1} parent=31 // pred_check_branch
          %322 = sbr.rel (%p320) target = $region52
        $region51: #{tpu_custom_call.1} parent=31 // pred_region
          %s324 = ssub.s32 16, 16
          %325 = vsyncadd [#allocation9], %s324
          %s327 = sshll.u32 [#allocation8], 4
          %s328 = int_to_ptr.vmem [resolvable:$true] %s327
          %330 = dma.vmem_to_hbm [thread:$0]  %s328, 16, %s4, [#allocation9]
        $region52: #{tpu_custom_call.1} parent=31 // pred_fallthru
          _
        // Predicated region
        $region53: #{tpu_custom_call.1} parent=31 // pred_check
          %p331 = pneg %p102
        $region54: #{tpu_custom_call.1} parent=31 // pred_check_branch
          %333 = sbr.rel (%p331) target = $region56
        $region55: #{tpu_custom_call.1} parent=31 // pred_region
          %334 = dma.done [#allocation6], 16
        $region56: #{tpu_custom_call.1} parent=31 // pred_fallthru
          _
        // Predicated region
        $region57: #{tpu_custom_call.1} parent=31 // pred_check
          %p335 = pneg %p123
        $region58: #{tpu_custom_call.1} parent=31 // pred_check_branch
          %337 = sbr.rel (%p335) target = $region60
        $region59: #{tpu_custom_call.1} parent=31 // pred_region
          %338 = dma.done [#allocation9], 16
        $region60: #{tpu_custom_call.1} parent=31 // pred_fallthru
          _
      $region32: #{tpu_custom_call.1} parent=5 // pred_fallthru
        _
      %p339 = scmp.le.s32.totalorder 2, %s16
      // Predicated region
      $region61: #{tpu_custom_call.1} parent=5 // pred_check
        %p340 = pneg %p339
      $region62: #{tpu_custom_call.1} parent=5 // pred_check_branch
        %342 = sbr.rel (%p340) target = $region64
      $region63: #{tpu_custom_call.1} parent=5 // pred_region
        %s343 = ssub.s32 %s16, 2
      $region64: #{tpu_custom_call.1} parent=5 // pred_fallthru
        _
    $region6: #{tpu_custom_call.1} parent=1 // loop_footer
      %s20 = sadd.s32 1, %s16
    $region7: #{tpu_custom_call.1} parent=1 // loop_footer_branch
      %15 = sbr.rel target = $region3
    $region8: #{tpu_custom_call.1} parent=1 // loop_exit
      _
    %344 = vsyncpa [#allocation5], 1
    %s345 = scalar_lea.sflag [#allocation5], 1
    %346 = vsyncpa %s345, 1
    %347 = vsyncpa [#allocation6], 1
    %s348 = scalar_lea.sflag [#allocation6], 1
    %349 = vsyncpa %s348, 1
    %350 = vsyncpa [#allocation9], 1

</llo_original>
